<compile_context>
chip_gen: v6e
topology: v6e:2x2x1
jax: 0.10.0
libtpu: 0.0.40
codegen_flags: <defaults>
</compile_context>

<pallas_src>
import functools

import jax
import jax.numpy as jnp
from jax.experimental import pallas as pl
from jax.experimental.pallas import tpu as pltpu


def _choose_batch_tile(N, Cb):
    """Images per grid step: fill the 8 f32 sublanes with nb*Cb channel rows,
    keep >= 2 grid steps when N >= 2 (v7x megacore), and require nb | N."""
    nb = max(1, 8 // max(Cb, 1))
    nb = min(nb, N)
    while nb > 1 and (N // nb < 2 or N % nb != 0):
        nb -= 1
    return nb


def _edge_masks(H, W):
    """(9, H*W) f32 validity masks for the 3x3 taps (host-precomputed so the kernel
    never spends VPU ops on iota / %W, even for non-power-of-two W)."""
    pos = jnp.arange(H * W, dtype=jnp.int32)
    h, w = pos // W, pos % W
    rows = []
    for di in (-1, 0, 1):
        for dj in (-1, 0, 1):
            ok = (h + di >= 0) & (h + di < H) & (w + dj >= 0) & (w + dj < W)
            rows.append(ok.astype(jnp.float32))
    return jnp.stack(rows, axis=0)


def _fold_params(raw, nb, eps=1e-5):
    """Fold BatchNorm (inference stats) into the convs and pre-pack kernel params.

    Returns:
      wmat (3, 2R, R): [0] block-diag 1x1 conv #1 (BN1 scale folded, zero-padded to
                       2R rows), [1] 1x1 conv #2 scattered to the ODD shuffled
                       output channels, [2] identity scattered to the EVEN channels
                       (x1 pass-through).  R = nb*Cb; kron(I_nb, .) makes one MXU
                       matmul cover all nb images packed on the sublane axis.
      paux (2R, 13):   cols 0..8 depthwise taps (BN2 scale folded), 9 BN1 shift,
                       10 BN2 shift, 11 conv #2 bias scattered to odd rows.
    """
    w1, g1, be1, m1, v1, dw, g2, be2, m2, v2, w3, b3 = raw
    Cb = w1.shape[0]
    C, R = 2 * Cb, nb * Cb
    f32 = jnp.float32

    scale1 = g1 / jnp.sqrt(v1 + eps)
    shift1 = be1 - m1 * scale1
    scale2 = g2 / jnp.sqrt(v2 + eps)
    shift2 = be2 - m2 * scale2

    w1s = w1[:, :, 0, 0] * scale1[:, None]            # (Cb, Cb) BN1 scale folded
    dws = dw[:, 0].reshape(Cb, 9) * scale2[:, None]    # (Cb, 9)  BN2 scale folded
    w3k = w3[:, :, 0, 0]                               # (Cb, Cb)

    # concat + channel_shuffle(groups=2): shuffled ch 2i <- x1[i], 2i+1 <- branch2[i]
    idx = jnp.arange(Cb)
    s_even = jnp.zeros((C, Cb), f32).at[2 * idx, idx].set(1.0)
    s_odd = jnp.zeros((C, Cb), f32).at[2 * idx + 1, idx].set(1.0)

    eye = jnp.eye(nb, dtype=f32)
    w1blk = jnp.kron(eye, w1s)                         # (R, R)
    w3e = jnp.kron(eye, s_odd @ w3k)                   # (2R, R)
    s1e = jnp.kron(eye, s_even)                        # (2R, R)
    wmat = jnp.stack(
        [jnp.concatenate([w1blk, jnp.zeros((R, R), f32)], axis=0), w3e, s1e],
        axis=0)

    paux = jnp.zeros((2 * R, 13), f32)
    paux = paux.at[:R, 0:9].set(jnp.tile(dws, (nb, 1)))
    paux = paux.at[:R, 9].set(jnp.tile(shift1, nb))
    paux = paux.at[:R, 10].set(jnp.tile(shift2, nb))
    paux = paux.at[:, 11].set(jnp.tile(s_odd @ b3, nb))
    return wmat, paux


def _inverted_residual_kernel(x_ref, w_ref, p_ref, m_ref, o_ref, *scratch,
                              nb, Cb, W):
    """One grid step = nb images; activations live as packed (R, P) slabs.

    x_ref : (nb, 2, Cb, P)   input, group 0 = x1 (pass-through), 1 = x2 (branch2)
    w_ref : (3, 2R, R)       packed matmul weights   (see _fold_params)
    p_ref : (2R, 13)         packed per-channel params
    m_ref : (9, P)           3x3 tap validity masks
    o_ref : (1, 2R, P)       dense, already channel-shuffled output block
    scratch: [(2, R, P) f32] sublane-packing buffer, only allocated when nb > 1
    """
    f32 = jnp.float32
    P = x_ref.shape[-1]
    R = nb * Cb

    # ---- stage x1 / x2 as packed (R, P) slabs (batch folded onto sublanes) ----
    if nb == 1:
        x1p = x_ref[0, 0, :, :].astype(f32)
        x2p = x_ref[0, 1, :, :].astype(f32)
    else:
        pack = scratch[0]
        for b in range(nb):                       # static unrolled, plain vst's
            pack[0, pl.ds(b * Cb, Cb), :] = x_ref[b, 0, :, :].astype(f32)
            pack[1, pl.ds(b * Cb, Cb), :] = x_ref[b, 1, :, :].astype(f32)
        x1p = pack[0]
        x2p = pack[1]

    w1 = w_ref[0, pl.ds(0, R), :]                 # (R, R)
    w3e = w_ref[1]                                # (2R, R)
    s1e = w_ref[2]                                # (2R, R)
    paux = p_ref[...]
    dwt = paux[:R, 0:9]                           # (R, 9) depthwise taps
    b1 = paux[:R, 9:10]
    b2 = paux[:R, 10:11]
    b3e = paux[:, 11:12]                          # (2R, 1)
    masks = m_ref[...]                            # (9, P)

    # ---- 1x1 conv (BN1 folded) + ReLU: one MXU matmul over the packed slab ----
    t = jnp.dot(w1, x2p, preferred_element_type=f32) + b1
    t = jnp.maximum(t, 0.0)

    # ---- 3x3 depthwise conv, stride 1, pad 1 (BN2 folded) --------------------
    # 9 taps as in-register lane rolls (XLU slot; no VMEM round-trip) times
    # host-precomputed border masks; the center tap initialises the accumulator.
    acc = t * dwt[:, 4:5]
    k = 0
    for di in (-1, 0, 1):
        for dj in (-1, 0, 1):
            if di == 0 and dj == 0:
                k += 1
                continue
            shift = (-(di * W + dj)) % P
            tap = pltpu.roll(t, shift=shift, axis=1)
            acc = acc + (tap * masks[k:k + 1, :]) * dwt[:, k:k + 1]
            k += 1
    acc = acc + b2

    # ---- final 1x1 conv + bias + ReLU, fused with concat + channel_shuffle ---
    # w3e/b3e are zero on the even shuffled rows, so ReLU leaves them at exactly
    # 0; s1e then adds the untouched x1 rows into those even channels.  The result
    # is a dense (2R, P) slab -> one full-width store, no masked / strided vst.
    y = jnp.maximum(jnp.dot(w3e, acc, preferred_element_type=f32) + b3e, 0.0)
    y = y + jnp.dot(s1e, x1p, preferred_element_type=f32)
    o_ref[0, :, :] = y.astype(o_ref.dtype)


def inverted_residual_stride1(x_nchw, raw_params):
    """InvertedResidual.forward, stride=1 configuration (NCHW in / NCHW out)."""
    N, C, H, W = x_nchw.shape
    Cb = C // 2
    P = H * W
    nb = _choose_batch_tile(N, Cb)
    R = nb * Cb
    G = N // nb

    wmat, paux = _fold_params(raw_params, nb)
    masks = _edge_masks(H, W)
    x_view = x_nchw.reshape(N, 2, Cb, P)          # free: NCHW is channel-major

    # Per-step VMEM at these shapes is tiny; for realistic large Cb on v7x keep
    # (nb * blocks * 2 double-buffers) well under the 64 MiB VMEM / 32 MiB default
    # scoped limit before raising nb.
    out = pl.pallas_call(
        functools.partial(_inverted_residual_kernel, nb=nb, Cb=Cb, W=W),
        out_shape=jax.ShapeDtypeStruct((G, 2 * R, P), x_nchw.dtype),
        grid=(G,),
        in_specs=[
            pl.BlockSpec((nb, 2, Cb, P), lambda n: (n, 0, 0, 0)),
            pl.BlockSpec((3, 2 * R, R), lambda n: (0, 0, 0)),
            pl.BlockSpec((2 * R, 13), lambda n: (0, 0)),
            pl.BlockSpec((9, P), lambda n: (0, 0)),
        ],
        out_specs=pl.BlockSpec((1, 2 * R, P), lambda n: (n, 0, 0)),
        scratch_shapes=([pltpu.VMEM((2, R, P), jnp.float32)] if nb > 1 else []),
        compiler_params=pltpu.CompilerParams(dimension_semantics=("parallel",)),
    )(x_view, wmat, paux, masks)

    # Rows of (G, nb*C, P) are already in global (image, shuffled-channel) order,
    # so this reshape is a pure metadata change (no transpose, no extra HBM pass).
    return out.reshape(N, C, H, W)


def init_raw_params(key, Cb):
    """PyTorch-shaped parameters of branch2 (stride=1), deterministic init."""
    ks = jax.random.split(key, 12)
    w1 = 0.2 * jax.random.normal(ks[0], (Cb, Cb, 1, 1), jnp.float32)      # OIHW
    g1 = 1.0 + 0.1 * jax.random.normal(ks[1], (Cb,), jnp.float32)
    be1 = 0.1 * jax.random.normal(ks[2], (Cb,), jnp.float32)
    m1 = 0.05 * jax.random.normal(ks[3], (Cb,), jnp.float32)
    v1 = 0.5 + 0.5 * jnp.abs(jax.random.normal(ks[4], (Cb,), jnp.float32))
    dw = 0.2 * jax.random.normal(ks[5], (Cb, 1, 3, 3), jnp.float32)       # depthwise OIHW
    g2 = 1.0 + 0.1 * jax.random.normal(ks[6], (Cb,), jnp.float32)
    be2 = 0.1 * jax.random.normal(ks[7], (Cb,), jnp.float32)
    m2 = 0.05 * jax.random.normal(ks[8], (Cb,), jnp.float32)
    v2 = 0.5 + 0.5 * jnp.abs(jax.random.normal(ks[9], (Cb,), jnp.float32))
    w3 = 0.2 * jax.random.normal(ks[10], (Cb, Cb, 1, 1), jnp.float32)
    b3 = 0.1 * jax.random.normal(ks[11], (Cb,), jnp.float32)
    return (w1, g1, be1, m1, v1, dw, g2, be2, m2, v2, w3, b3)


def reference(x, raw, eps=1e-5):
    """Pure-JAX/XLA reference matching the PyTorch forward (stride=1, BN eval)."""
    w1, g1, be1, m1, v1, dw, g2, be2, m2, v2, w3, b3 = raw
    N, C, H, W = x.shape
    Cb = C // 2
    prec = jax.lax.Precision.HIGHEST

    def bn(y, g, b, m, v):
        s = (g / jnp.sqrt(v + eps))[None, :, None, None]
        return (y - m[None, :, None, None]) * s + b[None, :, None, None]

    dn = ("NCHW", "OIHW", "NCHW")
    x1, x2 = x[:, :Cb], x[:, Cb:]
    t = jax.lax.conv_general_dilated(x2, w1, (1, 1), "VALID",
                                     dimension_numbers=dn, precision=prec)
    t = jax.nn.relu(bn(t, g1, be1, m1, v1))
    t = jax.lax.conv_general_dilated(t, dw, (1, 1), ((1, 1), (1, 1)),
                                     dimension_numbers=dn,
                                     feature_group_count=Cb, precision=prec)
    t = bn(t, g2, be2, m2, v2)
    t = jax.lax.conv_general_dilated(t, w3, (1, 1), "VALID",
                                     dimension_numbers=dn, precision=prec)
    t = jax.nn.relu(t + b3[None, :, None, None])
    out = jnp.concatenate([x1, t], axis=1)
    out = out.reshape(N, 2, C // 2, H, W).transpose(0, 2, 1, 3, 4).reshape(N, C, H, W)
    return out


if __name__ == "__main__":
    key = jax.random.PRNGKey(0)
    fwd = jax.jit(inverted_residual_stride1)

    def check(case_key, N, C, H, W, tol):
        kx, kp = jax.random.split(case_key)
        Cb = C // 2
        x = jax.random.normal(kx, (N, C, H, W), jnp.float32)
        raw = init_raw_params(kp, Cb)
        out = jax.block_until_ready(fwd(x, raw))
        ref = jax.block_until_ready(reference(x, raw))
        assert out.shape == (N, C, H, W)
        err = float(jnp.max(jnp.abs(out - ref)))
        assert jnp.allclose(out, ref, rtol=tol, atol=tol), (
            f"shape {(N, C, H, W)}: max abs err = {err}")

    # InvertedResidual(input_channel=8, output_channel=8, stride=1)
    check(jax.random.fold_in(key, 0), 2, 8, 16, 16, 1e-4)   # nb=1, grid=2 (both v7x TCs)
    check(jax.random.fold_in(key, 1), 4, 8, 16, 16, 1e-4)   # nb=2: batch packed onto sublanes
    # Realistic ShuffleNetV2 width (Cb=58): validates the large-channel MXU path.
    check(jax.random.fold_in(key, 2), 1, 116, 16, 16, 1e-3)
    print("KERNEL_OK")
</pallas_src>

<mosaic_0001>
module attributes {stable_mosaic.version = 11 : i64} {
  func.func @_inverted_residual_kernel(%arg0: i32, %arg1: memref<1x2x4x256xf32, #tpu.memory_space<vmem>>, %arg2: memref<3x8x4xf32, #tpu.memory_space<vmem>>, %arg3: memref<8x13xf32, #tpu.memory_space<vmem>>, %arg4: memref<9x256xf32, #tpu.memory_space<vmem>>, %arg5: memref<1x8x256xf32, #tpu.memory_space<vmem>>) attributes {dimension_semantics = [#tpu.dimension_semantics<parallel>], iteration_bounds = array<i64: 2>, scalar_prefetch = 0 : i64, scratch_operands = 0 : i64, tpu.core_type = #tpu.core_type<tc>, window_params = [{transform_indices = @transform_0, window_bounds = array<i64: 1, 2, 4, 256>}, {pipeline_mode = #tpu.pipeline_mode<synchronous>, transform_indices = @transform_1, window_bounds = array<i64: 3, 8, 4>}, {pipeline_mode = #tpu.pipeline_mode<synchronous>, transform_indices = @transform_2, window_bounds = array<i64: 8, 13>}, {pipeline_mode = #tpu.pipeline_mode<synchronous>, transform_indices = @transform_3, window_bounds = array<i64: 9, 256>}, {transform_indices = @transform_4, window_bounds = array<i64: 1, 8, 256>}]} {
    %c0 = arith.constant 0 : index
    %c0_0 = arith.constant 0 : index
    %c0_1 = arith.constant 0 : index
    %c0_2 = arith.constant 0 : index
    %0 = vector.load %arg1[%c0, %c0_0, %c0_1, %c0_2] : memref<1x2x4x256xf32, #tpu.memory_space<vmem>>, vector<1x1x4x256xf32>
    %1 = vector.shape_cast %0 : vector<1x1x4x256xf32> to vector<4x256xf32>
    %c0_3 = arith.constant 0 : index
    %c1 = arith.constant 1 : index
    %c0_4 = arith.constant 0 : index
    %c0_5 = arith.constant 0 : index
    %2 = vector.load %arg1[%c0_3, %c1, %c0_4, %c0_5] : memref<1x2x4x256xf32, #tpu.memory_space<vmem>>, vector<1x1x4x256xf32>
    %3 = vector.shape_cast %2 : vector<1x1x4x256xf32> to vector<4x256xf32>
    %c0_6 = arith.constant 0 : index
    %c0_7 = arith.constant 0 : index
    %c0_8 = arith.constant 0 : index
    %4 = vector.load %arg2[%c0_6, %c0_7, %c0_8] : memref<3x8x4xf32, #tpu.memory_space<vmem>>, vector<1x4x4xf32>
    %5 = vector.shape_cast %4 : vector<1x4x4xf32> to vector<4x4xf32>
    %c1_9 = arith.constant 1 : index
    %c0_10 = arith.constant 0 : index
    %c0_11 = arith.constant 0 : index
    %6 = vector.load %arg2[%c1_9, %c0_10, %c0_11] : memref<3x8x4xf32, #tpu.memory_space<vmem>>, vector<1x8x4xf32>
    %7 = vector.shape_cast %6 : vector<1x8x4xf32> to vector<8x4xf32>
    %c2 = arith.constant 2 : index
    %c0_12 = arith.constant 0 : index
    %c0_13 = arith.constant 0 : index
    %8 = vector.load %arg2[%c2, %c0_12, %c0_13] : memref<3x8x4xf32, #tpu.memory_space<vmem>>, vector<1x8x4xf32>
    %9 = vector.shape_cast %8 : vector<1x8x4xf32> to vector<8x4xf32>
    %c0_14 = arith.constant 0 : index
    %c0_15 = arith.constant 0 : index
    %10 = vector.load %arg3[%c0_14, %c0_15] : memref<8x13xf32, #tpu.memory_space<vmem>>, vector<8x13xf32>
    %11 = vector.extract_strided_slice %10 {offsets = [0, 0], sizes = [4, 9], strides = [1, 1]} : vector<8x13xf32> to vector<4x9xf32>
    %12 = vector.extract_strided_slice %10 {offsets = [0, 9], sizes = [4, 1], strides = [1, 1]} : vector<8x13xf32> to vector<4x1xf32>
    %13 = vector.extract_strided_slice %10 {offsets = [0, 10], sizes = [4, 1], strides = [1, 1]} : vector<8x13xf32> to vector<4x1xf32>
    %14 = vector.extract_strided_slice %10 {offsets = [0, 11], sizes = [8, 1], strides = [1, 1]} : vector<8x13xf32> to vector<8x1xf32>
    %c0_16 = arith.constant 0 : index
    %c0_17 = arith.constant 0 : index
    %15 = vector.load %arg4[%c0_16, %c0_17] : memref<9x256xf32, #tpu.memory_space<vmem>>, vector<9x256xf32>
    %cst = arith.constant dense<0.000000e+00> : vector<4x256xf32>
    %16 = tpu.matmul %5, %3, %cst {dimension_numbers = #tpu.dot_dimension_numbers<[1], [0], [0], [1], [0, 0, 1, 1], [], []>} : vector<4x4xf32>, vector<4x256xf32>, vector<4x256xf32> -> vector<4x256xf32>
    %17 = vector.broadcast %12 : vector<4x1xf32> to vector<4x256xf32>
    %18 = arith.addf %16, %17 : vector<4x256xf32>
    %cst_18 = arith.constant 0.000000e+00 : f32
    %19 = vector.broadcast %cst_18 : f32 to vector<4x256xf32>
    %20 = arith.maximumf %18, %19 : vector<4x256xf32>
    %21 = vector.extract_strided_slice %11 {offsets = [0, 4], sizes = [4, 1], strides = [1, 1]} : vector<4x9xf32> to vector<4x1xf32>
    %22 = vector.broadcast %21 : vector<4x1xf32> to vector<4x256xf32>
    %23 = arith.mulf %20, %22 : vector<4x256xf32>
    %c17_i32 = arith.constant 17 : i32
    %24 = tpu.dynamic_rotate %20 by %c17_i32 dim 1 : vector<4x256xf32>, i32 -> vector<4x256xf32>
    %25 = vector.extract_strided_slice %15 {offsets = [0, 0], sizes = [1, 256], strides = [1, 1]} : vector<9x256xf32> to vector<1x256xf32>
    %26 = vector.broadcast %25 : vector<1x256xf32> to vector<4x256xf32>
    %27 = arith.mulf %24, %26 : vector<4x256xf32>
    %28 = vector.extract_strided_slice %11 {offsets = [0, 0], sizes = [4, 1], strides = [1, 1]} : vector<4x9xf32> to vector<4x1xf32>
    %29 = vector.broadcast %28 : vector<4x1xf32> to vector<4x256xf32>
    %30 = arith.mulf %27, %29 : vector<4x256xf32>
    %31 = arith.addf %23, %30 : vector<4x256xf32>
    %c16_i32 = arith.constant 16 : i32
    %32 = tpu.dynamic_rotate %20 by %c16_i32 dim 1 : vector<4x256xf32>, i32 -> vector<4x256xf32>
    %33 = vector.extract_strided_slice %15 {offsets = [1, 0], sizes = [1, 256], strides = [1, 1]} : vector<9x256xf32> to vector<1x256xf32>
    %34 = vector.broadcast %33 : vector<1x256xf32> to vector<4x256xf32>
    %35 = arith.mulf %32, %34 : vector<4x256xf32>
    %36 = vector.extract_strided_slice %11 {offsets = [0, 1], sizes = [4, 1], strides = [1, 1]} : vector<4x9xf32> to vector<4x1xf32>
    %37 = vector.broadcast %36 : vector<4x1xf32> to vector<4x256xf32>
    %38 = arith.mulf %35, %37 : vector<4x256xf32>
    %39 = arith.addf %31, %38 : vector<4x256xf32>
    %c15_i32 = arith.constant 15 : i32
    %40 = tpu.dynamic_rotate %20 by %c15_i32 dim 1 : vector<4x256xf32>, i32 -> vector<4x256xf32>
    %41 = vector.extract_strided_slice %15 {offsets = [2, 0], sizes = [1, 256], strides = [1, 1]} : vector<9x256xf32> to vector<1x256xf32>
    %42 = vector.broadcast %41 : vector<1x256xf32> to vector<4x256xf32>
    %43 = arith.mulf %40, %42 : vector<4x256xf32>
    %44 = vector.extract_strided_slice %11 {offsets = [0, 2], sizes = [4, 1], strides = [1, 1]} : vector<4x9xf32> to vector<4x1xf32>
    %45 = vector.broadcast %44 : vector<4x1xf32> to vector<4x256xf32>
    %46 = arith.mulf %43, %45 : vector<4x256xf32>
    %47 = arith.addf %39, %46 : vector<4x256xf32>
    %c1_i32 = arith.constant 1 : i32
    %48 = tpu.dynamic_rotate %20 by %c1_i32 dim 1 : vector<4x256xf32>, i32 -> vector<4x256xf32>
    %49 = vector.extract_strided_slice %15 {offsets = [3, 0], sizes = [1, 256], strides = [1, 1]} : vector<9x256xf32> to vector<1x256xf32>
    %50 = vector.broadcast %49 : vector<1x256xf32> to vector<4x256xf32>
    %51 = arith.mulf %48, %50 : vector<4x256xf32>
    %52 = vector.extract_strided_slice %11 {offsets = [0, 3], sizes = [4, 1], strides = [1, 1]} : vector<4x9xf32> to vector<4x1xf32>
    %53 = vector.broadcast %52 : vector<4x1xf32> to vector<4x256xf32>
    %54 = arith.mulf %51, %53 : vector<4x256xf32>
    %55 = arith.addf %47, %54 : vector<4x256xf32>
    %c255_i32 = arith.constant 255 : i32
    %56 = tpu.dynamic_rotate %20 by %c255_i32 dim 1 : vector<4x256xf32>, i32 -> vector<4x256xf32>
    %57 = vector.extract_strided_slice %15 {offsets = [5, 0], sizes = [1, 256], strides = [1, 1]} : vector<9x256xf32> to vector<1x256xf32>
    %58 = vector.broadcast %57 : vector<1x256xf32> to vector<4x256xf32>
    %59 = arith.mulf %56, %58 : vector<4x256xf32>
    %60 = vector.extract_strided_slice %11 {offsets = [0, 5], sizes = [4, 1], strides = [1, 1]} : vector<4x9xf32> to vector<4x1xf32>
    %61 = vector.broadcast %60 : vector<4x1xf32> to vector<4x256xf32>
    %62 = arith.mulf %59, %61 : vector<4x256xf32>
    %63 = arith.addf %55, %62 : vector<4x256xf32>
    %c241_i32 = arith.constant 241 : i32
    %64 = tpu.dynamic_rotate %20 by %c241_i32 dim 1 : vector<4x256xf32>, i32 -> vector<4x256xf32>
    %65 = vector.extract_strided_slice %15 {offsets = [6, 0], sizes = [1, 256], strides = [1, 1]} : vector<9x256xf32> to vector<1x256xf32>
    %66 = vector.broadcast %65 : vector<1x256xf32> to vector<4x256xf32>
    %67 = arith.mulf %64, %66 : vector<4x256xf32>
    %68 = vector.extract_strided_slice %11 {offsets = [0, 6], sizes = [4, 1], strides = [1, 1]} : vector<4x9xf32> to vector<4x1xf32>
    %69 = vector.broadcast %68 : vector<4x1xf32> to vector<4x256xf32>
    %70 = arith.mulf %67, %69 : vector<4x256xf32>
    %71 = arith.addf %63, %70 : vector<4x256xf32>
    %c240_i32 = arith.constant 240 : i32
    %72 = tpu.dynamic_rotate %20 by %c240_i32 dim 1 : vector<4x256xf32>, i32 -> vector<4x256xf32>
    %73 = vector.extract_strided_slice %15 {offsets = [7, 0], sizes = [1, 256], strides = [1, 1]} : vector<9x256xf32> to vector<1x256xf32>
    %74 = vector.broadcast %73 : vector<1x256xf32> to vector<4x256xf32>
    %75 = arith.mulf %72, %74 : vector<4x256xf32>
    %76 = vector.extract_strided_slice %11 {offsets = [0, 7], sizes = [4, 1], strides = [1, 1]} : vector<4x9xf32> to vector<4x1xf32>
    %77 = vector.broadcast %76 : vector<4x1xf32> to vector<4x256xf32>
    %78 = arith.mulf %75, %77 : vector<4x256xf32>
    %79 = arith.addf %71, %78 : vector<4x256xf32>
    %c239_i32 = arith.constant 239 : i32
    %80 = tpu.dynamic_rotate %20 by %c239_i32 dim 1 : vector<4x256xf32>, i32 -> vector<4x256xf32>
    %81 = vector.extract_strided_slice %15 {offsets = [8, 0], sizes = [1, 256], strides = [1, 1]} : vector<9x256xf32> to vector<1x256xf32>
    %82 = vector.broadcast %81 : vector<1x256xf32> to vector<4x256xf32>
    %83 = arith.mulf %80, %82 : vector<4x256xf32>
    %84 = vector.extract_strided_slice %11 {offsets = [0, 8], sizes = [4, 1], strides = [1, 1]} : vector<4x9xf32> to vector<4x1xf32>
    %85 = vector.broadcast %84 : vector<4x1xf32> to vector<4x256xf32>
    %86 = arith.mulf %83, %85 : vector<4x256xf32>
    %87 = arith.addf %79, %86 : vector<4x256xf32>
    %88 = vector.broadcast %13 : vector<4x1xf32> to vector<4x256xf32>
    %89 = arith.addf %87, %88 : vector<4x256xf32>
    %cst_19 = arith.constant dense<0.000000e+00> : vector<8x256xf32>
    %90 = tpu.matmul %7, %89, %cst_19 {dimension_numbers = #tpu.dot_dimension_numbers<[1], [0], [0], [1], [0, 0, 1, 1], [], []>} : vector<8x4xf32>, vector<4x256xf32>, vector<8x256xf32> -> vector<8x256xf32>
    %91 = vector.broadcast %14 : vector<8x1xf32> to vector<8x256xf32>
    %92 = arith.addf %90, %91 : vector<8x256xf32>
    %cst_20 = arith.constant 0.000000e+00 : f32
    %93 = vector.broadcast %cst_20 : f32 to vector<8x256xf32>
    %94 = arith.maximumf %92, %93 : vector<8x256xf32>
    %cst_21 = arith.constant dense<0.000000e+00> : vector<8x256xf32>
    %95 = tpu.matmul %9, %1, %cst_21 {dimension_numbers = #tpu.dot_dimension_numbers<[1], [0], [0], [1], [0, 0, 1, 1], [], []>} : vector<8x4xf32>, vector<4x256xf32>, vector<8x256xf32> -> vector<8x256xf32>
    %96 = arith.addf %94, %95 : vector<8x256xf32>
    %c0_22 = arith.constant 0 : index
    %c0_23 = arith.constant 0 : index
    %c0_24 = arith.constant 0 : index
    %97 = vector.load %arg5[%c0_22, %c0_23, %c0_24] : memref<1x8x256xf32, #tpu.memory_space<vmem>>, vector<1x8x256xf32>
    %98 = vector.shape_cast %97 : vector<1x8x256xf32> to vector<8x256xf32>
    %99 = vector.shape_cast %96 : vector<8x256xf32> to vector<1x8x256xf32>
    tpu.vector_store %arg5[%c0_22, %c0_23, %c0_24], %99 {strides = array<i32>} : memref<1x8x256xf32, #tpu.memory_space<vmem>>, vector<1x8x256xf32>,
    return
  }
  func.func @transform_0(%arg0: i32) -> (i32, i32, i32, i32) {
    %c0_i32 = arith.constant 0 : i32
    %c0_i32_0 = arith.constant 0 : i32
    %c0_i32_1 = arith.constant 0 : i32
    %c0_i32_2 = arith.constant 0 : i32
    return %arg0, %c0_i32, %c0_i32_0, %c0_i32_1 : i32, i32, i32, i32
  }
  func.func @transform_1(%arg0: i32) -> (i32, i32, i32) {
    %c0_i32 = arith.constant 0 : i32
    %c0_i32_0 = arith.constant 0 : i32
    %c0_i32_1 = arith.constant 0 : i32
    %c0_i32_2 = arith.constant 0 : i32
    return %c0_i32, %c0_i32_0, %c0_i32_1 : i32, i32, i32
  }
  func.func @transform_2(%arg0: i32) -> (i32, i32) {
    %c0_i32 = arith.constant 0 : i32
    %c0_i32_0 = arith.constant 0 : i32
    %c0_i32_1 = arith.constant 0 : i32
    return %c0_i32, %c0_i32_0 : i32, i32
  }
  func.func @transform_3(%arg0: i32) -> (i32, i32) {
    %c0_i32 = arith.constant 0 : i32
    %c0_i32_0 = arith.constant 0 : i32
    %c0_i32_1 = arith.constant 0 : i32
    return %c0_i32, %c0_i32_0 : i32, i32
  }
  func.func @transform_4(%arg0: i32) -> (i32, i32, i32) {
    %c0_i32 = arith.constant 0 : i32
    %c0_i32_0 = arith.constant 0 : i32
    %c0_i32_1 = arith.constant 0 : i32
    return %arg0, %c0_i32, %c0_i32_0 : i32, i32, i32
  }
}

</mosaic_0001>

<llo_original>
// kernel: inverted_residual_stride1.1
$region0: #{inverted_residual_stride1.1}
  #allocation0 [shape = 'u32[]', space=smem, size = 0x4, offset = 0x4, fixed_abs, tag = 'smem constant byte address 0x4 - core index']
  #allocation1 [shape = 'u32[144,128]{1,0:T(1,128)}', space=vmem, size = 0x12000, scoped, tag = 'internal scratch']
  %s0 = inlined_call_operand.vmem [shape: f32[2,2,4,256], index: 0, kind: input, shape index: {}]
  %s1 = inlined_call_operand.vmem [shape: f32[3,8,4], index: 1, kind: input, shape index: {}]
  %s2 = inlined_call_operand.vmem [shape: f32[8,13], index: 2, kind: input, shape index: {}]
  %s3 = inlined_call_operand.vmem [shape: f32[9,256], index: 3, kind: input, shape index: {}]
  %s4 = inlined_call_operand.vmem [shape: f32[2,8,256], index: 4, kind: output, shape index: {}]
  %s5 = sld [smem:[#allocation0]]
  $region49: #{inverted_residual_stride1.1} parent=0
    _
  %s7 = ssub.s32 1, %s5
  %s8 = scalar_select 0, %s7, %s5
  loop: start=0, step=1, limit=4
  $region2: #{inverted_residual_stride1.1} parent=0 // loop_pre_header
    _
  $region3: #{inverted_residual_stride1.1} parent=0 // loop_header
    %s10 = sphi 0, %s14
    %p11 = scmp.ge.s32.totalorder %s10, 4
    %s20 = sphi 0, %s22
    %s23 = sphi 0, %s20
    %s24 = sphi 0, %s23
    %s40 = sphi 0, %s24
    %s44 = sphi 0, %s44
    %s46 = sphi 0, %s44
    %s47 = sphi 0, %s46
    %s61 = sphi 0, %s47
    %s65 = sphi 0, %s65
    %s67 = sphi 0, %s65
    %s68 = sphi 0, %s67
    %s82 = sphi 0, %s68
    %s86 = sphi 0, %s86
    %s88 = sphi 0, %s86
    %s89 = sphi 0, %s88
    %s103 = sphi 0, %s89
    %s109 = sphi 0, %s111
    %s112 = sphi 0, %s109
    %s113 = sphi 0, %s112
    %s129 = sphi 0, %s113
  $region4: #{inverted_residual_stride1.1} parent=0 // loop_header_branch
    %13 = sbr.rel (%p11) target = $region8
  $region5: #{inverted_residual_stride1.1} parent=0 // loop_body
    %s15 = ssub.s32 %s10, 1
    %s16 = ssub.s32 %s10, 2
    %s17 = sadd.s32 %s10, 1
    %s18 = ssub.s32 %s10, %s17
    %p19 = scmp.eq.s32.totalorder %s18, 0
    %s21 = sadd.s32 %s20, 1
    %s22 = scalar_select %p19, %s20, %s21
    %p25 = pneg %p19
    %p26 = scmp.eq.s32.totalorder %s10, 1
    %p27 = por %p25, %p26
    %p28 = scmp.ne.s32.totalorder %s20, %s23
    %p29 = scmp.eq.s32.totalorder %s10, 0
    %p30 = por %p28, %p29
    %p31 = scmp.ne.s32.totalorder %s20, %s23
    %p32 = scmp.eq.s32.totalorder %s15, 1
    %p33 = por %p31, %p32
    %p34 = scmp.ne.s32.totalorder %s23, %s24
    %p35 = scmp.eq.s32.totalorder %s15, 0
    %p36 = por %p34, %p35
    %p37 = scmp.ne.s32.totalorder %s23, %s24
    %p38 = scmp.eq.s32.totalorder %s16, 1
    %p39 = por %p37, %p38
    %p41 = scmp.ne.s32.totalorder %s24, %s40
    %p42 = scmp.eq.s32.totalorder %s16, 0
    %p43 = por %p41, %p42
    %s45 = sadd.s32 %s44, 1
    %p48 = scmp.eq.s32.totalorder %s10, 1
    %p49 = scmp.ne.s32.totalorder %s44, %s46
    %p50 = scmp.eq.s32.totalorder %s10, 0
    %p51 = por %p49, %p50
    %p52 = scmp.ne.s32.totalorder %s44, %s46
    %p53 = scmp.eq.s32.totalorder %s15, 1
    %p54 = por %p52, %p53
    %p55 = scmp.ne.s32.totalorder %s46, %s47
    %p56 = scmp.eq.s32.totalorder %s15, 0
    %p57 = por %p55, %p56
    %p58 = scmp.ne.s32.totalorder %s46, %s47
    %p59 = scmp.eq.s32.totalorder %s16, 1
    %p60 = por %p58, %p59
    %p62 = scmp.ne.s32.totalorder %s47, %s61
    %p63 = scmp.eq.s32.totalorder %s16, 0
    %p64 = por %p62, %p63
    %s66 = sadd.s32 %s65, 1
    %p69 = scmp.eq.s32.totalorder %s10, 1
    %p70 = scmp.ne.s32.totalorder %s65, %s67
    %p71 = scmp.eq.s32.totalorder %s10, 0
    %p72 = por %p70, %p71
    %p73 = scmp.ne.s32.totalorder %s65, %s67
    %p74 = scmp.eq.s32.totalorder %s15, 1
    %p75 = por %p73, %p74
    %p76 = scmp.ne.s32.totalorder %s67, %s68
    %p77 = scmp.eq.s32.totalorder %s15, 0
    %p78 = por %p76, %p77
    %p79 = scmp.ne.s32.totalorder %s67, %s68
    %p80 = scmp.eq.s32.totalorder %s16, 1
    %p81 = por %p79, %p80
    %p83 = scmp.ne.s32.totalorder %s68, %s82
    %p84 = scmp.eq.s32.totalorder %s16, 0
    %p85 = por %p83, %p84
    %s87 = sadd.s32 %s86, 1
    %p90 = scmp.eq.s32.totalorder %s10, 1
    %p91 = scmp.ne.s32.totalorder %s86, %s88
    %p92 = scmp.eq.s32.totalorder %s10, 0
    %p93 = por %p91, %p92
    %p94 = scmp.ne.s32.totalorder %s86, %s88
    %p95 = scmp.eq.s32.totalorder %s15, 1
    %p96 = por %p94, %p95
    %p97 = scmp.ne.s32.totalorder %s88, %s89
    %p98 = scmp.eq.s32.totalorder %s15, 0
    %p99 = por %p97, %p98
    %p100 = scmp.ne.s32.totalorder %s88, %s89
    %p101 = scmp.eq.s32.totalorder %s16, 1
    %p102 = por %p100, %p101
    %p104 = scmp.ne.s32.totalorder %s89, %s103
    %p105 = scmp.eq.s32.totalorder %s16, 0
    %p106 = por %p104, %p105
    %s107 = ssub.s32 %s10, %s17
    %p108 = scmp.eq.s32.totalorder %s107, 0
    %s110 = sadd.s32 %s109, 1
    %s111 = scalar_select %p108, %s109, %s110
    %p114 = pneg %p108
    %p115 = scmp.eq.s32.totalorder %s10, 1
    %p116 = por %p114, %p115
    %p117 = scmp.ne.s32.totalorder %s109, %s112
    %p118 = scmp.eq.s32.totalorder %s10, 0
    %p119 = por %p117, %p118
    %p120 = scmp.ne.s32.totalorder %s109, %s112
    %p121 = scmp.eq.s32.totalorder %s15, 1
    %p122 = por %p120, %p121
    %p123 = scmp.ne.s32.totalorder %s112, %s113
    %p124 = scmp.eq.s32.totalorder %s15, 0
    %p125 = por %p123, %p124
    %p126 = scmp.ne.s32.totalorder %s112, %s113
    %p127 = scmp.eq.s32.totalorder %s16, 1
    %p128 = por %p126, %p127
    %p130 = scmp.ne.s32.totalorder %s113, %s129
    %p131 = scmp.eq.s32.totalorder %s16, 0
    %p132 = por %p130, %p131
    %p133 = scmp.le.s32.totalorder 1, %s10
    %p134 = scmp.lt.s32.totalorder %s10, 3
    %p135 = pnand %p133, %p134
    %p136 = pneg %p135
    // Predicated region
    $region9: #{inverted_residual_stride1.1} parent=5 // pred_check
      _
    $region10: #{inverted_residual_stride1.1} parent=5 // pred_check_branch
      %138 = sbr.rel (%p135) target = $region12
    $region11: #{inverted_residual_stride1.1} parent=5 // pred_region
      %s139 = ssub.s32 %s10, 1
      // Predicated region
      $region13: #{inverted_residual_stride1.1} parent=11 // pred_check
        %p140 = pneg %p57
      $region14: #{inverted_residual_stride1.1} parent=11 // pred_check_branch
        %142 = sbr.rel (%p140) target = $region16
      $region15: #{inverted_residual_stride1.1} parent=11 // pred_region
        _
      $region16: #{inverted_residual_stride1.1} parent=11 // pred_fallthru
        _
      // Predicated region
      $region17: #{inverted_residual_stride1.1} parent=11 // pred_check
        %p143 = pneg %p78
      $region18: #{inverted_residual_stride1.1} parent=11 // pred_check_branch
        %145 = sbr.rel (%p143) target = $region20
      $region19: #{inverted_residual_stride1.1} parent=11 // pred_region
        _
      $region20: #{inverted_residual_stride1.1} parent=11 // pred_fallthru
        _
      // Predicated region
      $region21: #{inverted_residual_stride1.1} parent=11 // pred_check
        %p146 = pneg %p99
      $region22: #{inverted_residual_stride1.1} parent=11 // pred_check_branch
        %148 = sbr.rel (%p146) target = $region24
      $region23: #{inverted_residual_stride1.1} parent=11 // pred_region
        _
      $region24: #{inverted_residual_stride1.1} parent=11 // pred_fallthru
        _
    $region12: #{inverted_residual_stride1.1} parent=5 // pred_fallthru
      _
    %p149 = scmp.lt.s32.totalorder %s10, 2
    // Predicated region
    $region25: #{inverted_residual_stride1.1} parent=5 // pred_check
      %p150 = pneg %p149
    $region26: #{inverted_residual_stride1.1} parent=5 // pred_check_branch
      %152 = sbr.rel (%p150) target = $region28
    $region27: #{inverted_residual_stride1.1} parent=5 // pred_region
      // Predicated region
      $region29: #{inverted_residual_stride1.1} parent=27 // pred_check
        %p153 = pneg %p30
      $region30: #{inverted_residual_stride1.1} parent=27 // pred_check_branch
        %155 = sbr.rel (%p153) target = $region32
      $region31: #{inverted_residual_stride1.1} parent=27 // pred_region
        %p156 = scmp.lt.s32.totalorder %s10, 1
        %s157 = scalar_select %p156, %s10, 1
        %s158 = smul.addr %s157, 4
        %s159 = smul.addr %s158, 4
        %s160 = scalar_lea.vmem %s0, %s159
      $region32: #{inverted_residual_stride1.1} parent=27 // pred_fallthru
        _
    $region28: #{inverted_residual_stride1.1} parent=5 // pred_fallthru
      _
    %p161 = scmp.le.s32.totalorder 1, %s10
    %p162 = scmp.lt.s32.totalorder %s10, 3
    %p163 = pnand %p161, %p162
    %p164 = pneg %p163
    // Predicated region
    $region33: #{inverted_residual_stride1.1} parent=5 // pred_check
      _
    $region34: #{inverted_residual_stride1.1} parent=5 // pred_check_branch
      %166 = sbr.rel (%p163) target = $region36
    $region35: #{inverted_residual_stride1.1} parent=5 // pred_region
      %s167 = ssub.s32 %s10, 1
      %p168 = scmp.lt.s32.totalorder %s15, 1
      %s169 = scalar_select %p168, %s15, 1
      %s170 = smul.addr %s169, 4
      %s171 = smul.addr %s170, 4
      %s172 = scalar_lea.vmem %s0, %s171
      %p173 = pneg %p36
      %p174 = pneg %p33
      %p175 = pneg %p57
      %p176 = pneg %p54
      %p177 = pneg %p78
      %p178 = pneg %p75
      %p179 = pneg %p99
      %p180 = pneg %p96
      %p181 = pneg %p125
      %p182 = pneg %p122
      %p183 = scmp.lt.s32.totalorder %s15, 1
      %s184 = scalar_select %p183, %s15, 1
      %s185 = smul.addr %s184, 2
      %s186 = smul.addr %s185, 8
      %s187 = scalar_lea.vmem %s4, %s186
      %p188 = scmp.lt.s32.totalorder %s15, 1
      %s189 = scalar_select %p188, %s15, 1
      %s190 = smul.addr %s189, 4
      %s191 = smul.addr %s190, 4
      %s192 = scalar_lea.vmem %s0, %s191
      %p193 = scmp.lt.s32.totalorder %s15, 1
      %s194 = scalar_select %p193, %s15, 1
      %s195 = smul.addr %s194, 2
      %s196 = smul.addr %s195, 8
      %s197 = scalar_lea.vmem %s4, %s196
      %v198 = vld [vmem:[%s192] sm:$0xff]
      %s199 = scalar_lea.vmem %s192, 8
      %v200 = vld [vmem:[%s199] sm:$0xff]
      %v201 = vld [vmem:[%s1] sm:$0xf]
      %s202 = scalar_lea.vmem %s1, 8
      %v203 = vld [vmem:[%s202] sm:$0xff]
      %s204 = scalar_lea.vmem %s1, 16
      %v205 = vld [vmem:[%s204] sm:$0xff]
      %v206 = vld [vmem:[%s2] sm:$0xff]
      %v207 = vld [vmem:[%s3] sm:$0xff]
      %v208 = vld [vmem:[%s3 + $0x8] sm:$0xff]
      %v209 = vld [vmem:[%s3 + $0x10] sm:$0x1]
      %v210 = vld [vmem:[%s3 + $0x18] sm:$0x1]
      %212 = vset.pattern.permute.xlu0 9
      %213 = vperm.xlu0 %212, %v206
      %v214 = vpop.permute.xlu0 %213
      %v217 = vcombine.high %v200, %v200
      %vm218 = vcmask 31744
      %v220 = vsel %vm218, %v201, 0
      %vm222 = vcmask 1043456
      %v223 = vsel %vm222, %v200, 0
      %v225 = vsel %vm222, %v217, 0
      %227 = vmatprep.subr.mxu0 0.0
      %228 = vmatpush1.msra.mxu0 0.0
      %229 = vmatprep.subr.mxu0 0.0
      %230 = vmatpush1.msra.mxu0 0.0
      %231 = vmatprep.subr.mxu0 0.0
      %232 = vmatpush1.msra.mxu0 0.0
      %233 = vmatprep.subr.mxu0 0.0
      %234 = vmatpush1.msra.mxu0 0.0
      %235 = vmatprep.subr.mxu0 0.0
      %236 = vmatpush1.msra.mxu0 0.0
      %237 = vmatprep.subr.mxu0 0.0
      %238 = vmatpush1.msra.mxu0 0.0
      %239 = vmatprep.subr.mxu0 0.0
      %240 = vmatpush1.msra.mxu0 0.0
      %241 = vmatprep.subr.mxu0 0.0
      %242 = vmatpush1.msra.mxu0 0.0
      %243 = vmatprep.subr.mxu0 0.0
      %244 = vmatpush1.msra.mxu0 0.0
      %245 = vmatprep.subr.mxu0 0.0
      %246 = vmatpush1.msra.mxu0 0.0
      %247 = vmatprep.subr.mxu0 0.0
      %248 = vmatpush1.msra.mxu0 0.0
      %249 = vmatprep.subr.mxu0 0.0
      %250 = vmatpush1.msra.mxu0 0.0
      %251 = vmatprep.subr.mxu0 0.0
      %252 = vmatpush1.msra.mxu0 0.0
      %253 = vmatprep.subr.mxu0 0.0
      %254 = vmatpush1.msra.mxu0 0.0
      %255 = vmatprep.subr.mxu0 0.0
      %256 = vmatpush1.msra.mxu0 0.0
      %257 = vmatprep.subr.mxu0 %v225
      %258 = vmatpush1.msra.mxu0 %v223
      %259 = vmatprep.subr.mxu0 0.0
      %260 = vmatpush2.msra.mxu0 0.0
      %261 = vmatprep.subr.mxu0 0.0
      %262 = vmatpush2.msra.mxu0 0.0
      %263 = vmatprep.subr.mxu0 0.0
      %264 = vmatpush2.msra.mxu0 0.0
      %265 = vmatprep.subr.mxu0 0.0
      %266 = vmatpush2.msra.mxu0 0.0
      %267 = vmatprep.subr.mxu0 0.0
      %268 = vmatpush2.msra.mxu0 0.0
      %269 = vmatprep.subr.mxu0 0.0
      %270 = vmatpush2.msra.mxu0 0.0
      %271 = vmatprep.subr.mxu0 0.0
      %272 = vmatpush2.msra.mxu0 0.0
      %273 = vmatprep.subr.mxu0 0.0
      %274 = vmatpush2.msra.mxu0 0.0
      %275 = vmatprep.subr.mxu0 0.0
      %276 = vmatpush2.msra.mxu0 0.0
      %277 = vmatprep.subr.mxu0 0.0
      %278 = vmatpush2.msra.mxu0 0.0
      %279 = vmatprep.subr.mxu0 0.0
      %280 = vmatpush2.msra.mxu0 0.0
      %281 = vmatprep.subr.mxu0 0.0
      %282 = vmatpush2.msra.mxu0 0.0
      %283 = vmatprep.subr.mxu0 0.0
      %284 = vmatpush2.msra.mxu0 0.0
      %285 = vmatprep.subr.mxu0 0.0
      %286 = vmatpush2.msra.mxu0 0.0
      %287 = vmatprep.subr.mxu0 0.0
      %288 = vmatpush2.msra.mxu0 0.0
      %289 = vmatprep.subr.mxu0 0.0
      %290 = vmatpush2.msra.mxu0 0.0
      %291 = vmatprep.mubr.f32.mxu0 0.0
      %292 = vmatmul.mubr.f32.gmra.mxu0 %v220
      %v293 = vpop.f32.mrf.mxu0
      %v294 = vadd.f32 %v214, %v293
      %v295 = vpop.f32.mrf.mxu0
      %v296 = vadd.f32 %v214, %v295
      %297 = vdwg.mxu0
      %v298 = vmax.f32 %v294, 0.0
      %v299 = vmax.f32 %v296, 0.0
      %300 = vset.pattern.permute.xlu0 4
      %301 = vperm.xlu0 %300, %v206
      %v302 = vpop.permute.xlu0 %301
      %v304 = vmul.f32 %v298, %v302
      %v305 = vmul.f32 %v299, %v302
      %306 = vrot.lane.b32.xlu0 %v298, 17
      %v307 = vpop.permute.xlu0 %306
      %308 = vrot.lane.b32.xlu0 %v299, 17
      %v309 = vpop.permute.xlu0 %308
      %v310 = vlaneseq
      %v311 = vand.u32 %v310, 127
      %vm312 = vcmp.lt.s32.totalorder %v311, 17
      %v313 = vsel %vm312, %v307, %v309
      %v314 = vsel %vm312, %v309, %v307
      %v315 = vlaneseq
      %v316 = vshrl.u32 %v315, 7
      %v317 = vsub.s32 0, %v316
      %v318 = vrot.slane %v207, %v317
      %v319 = vlaneseq
      %v320 = vshrl.u32 %v319, 7
      %v321 = vsub.s32 0, %v320
      %v322 = vrot.slane %v208, %v321
      %v323 = vmul.f32 %v314, %v318
      %v324 = vmul.f32 %v313, %v322
      %325 = vset.pattern.permute.xlu0 0
      %326 = vperm.xlu0 %325, %v206
      %v327 = vpop.permute.xlu0 %326
      %v329 = vmul.f32 %v323, %v327
      %v330 = vmul.f32 %v324, %v327
      %v331 = vadd.f32 %v304, %v329
      %v332 = vadd.f32 %v305, %v330
      %333 = vrot.lane.b32.xlu0 %v298, 16
      %v334 = vpop.permute.xlu0 %333
      %335 = vrot.lane.b32.xlu0 %v299, 16
      %v336 = vpop.permute.xlu0 %335
      %vm337 = vcmp.lt.s32.totalorder %v311, 16
      %v338 = vsel %vm337, %v334, %v336
      %v339 = vsel %vm337, %v336, %v334
      %v340 = vlaneseq
      %v341 = vshrl.u32 %v340, 7
      %v342 = vsub.s32 1, %v341
      %v343 = vrot.slane %v207, %v342
      %v344 = vlaneseq
      %v345 = vshrl.u32 %v344, 7
      %v346 = vsub.s32 1, %v345
      %v347 = vrot.slane %v208, %v346
      %v348 = vmul.f32 %v339, %v343
      %v349 = vmul.f32 %v338, %v347
      %350 = vset.pattern.permute.xlu0 1
      %351 = vperm.xlu0 %350, %v206
      %v352 = vpop.permute.xlu0 %351
      %v354 = vmul.f32 %v348, %v352
      %v355 = vmul.f32 %v349, %v352
      %v356 = vadd.f32 %v331, %v354
      %v357 = vadd.f32 %v332, %v355
      %358 = vrot.lane.b32.xlu0 %v298, 15
      %v359 = vpop.permute.xlu0 %358
      %360 = vrot.lane.b32.xlu0 %v299, 15
      %v361 = vpop.permute.xlu0 %360
      %vm362 = vcmp.lt.s32.totalorder %v311, 15
      %v363 = vsel %vm362, %v359, %v361
      %v364 = vsel %vm362, %v361, %v359
      %v365 = vlaneseq
      %v366 = vshrl.u32 %v365, 7
      %v367 = vsub.s32 2, %v366
      %v368 = vrot.slane %v207, %v367
      %v369 = vlaneseq
      %v370 = vshrl.u32 %v369, 7
      %v371 = vsub.s32 2, %v370
      %v372 = vrot.slane %v208, %v371
      %v373 = vmul.f32 %v364, %v368
      %v374 = vmul.f32 %v363, %v372
      %375 = vset.pattern.permute.xlu0 2
      %376 = vperm.xlu0 %375, %v206
      %v377 = vpop.permute.xlu0 %376
      %v379 = vmul.f32 %v373, %v377
      %v380 = vmul.f32 %v374, %v377
      %v381 = vadd.f32 %v356, %v379
      %v382 = vadd.f32 %v357, %v380
      %383 = vrot.lane.b32.xlu0 %v298, 1
      %v384 = vpop.permute.xlu0 %383
      %385 = vrot.lane.b32.xlu0 %v299, 1
      %v386 = vpop.permute.xlu0 %385
      %vm387 = vcmp.lt.s32.totalorder %v311, 1
      %v388 = vsel %vm387, %v384, %v386
      %v389 = vsel %vm387, %v386, %v384
      %v390 = vlaneseq
      %v391 = vshrl.u32 %v390, 7
      %v392 = vsub.s32 3, %v391
      %v393 = vrot.slane %v207, %v392
      %v394 = vlaneseq
      %v395 = vshrl.u32 %v394, 7
      %v396 = vsub.s32 3, %v395
      %v397 = vrot.slane %v208, %v396
      %v398 = vmul.f32 %v389, %v393
      %v399 = vmul.f32 %v388, %v397
      %400 = vset.pattern.permute.xlu0 3
      %401 = vperm.xlu0 %400, %v206
      %v402 = vpop.permute.xlu0 %401
      %v404 = vmul.f32 %v398, %v402
      %v405 = vmul.f32 %v399, %v402
      %v406 = vadd.f32 %v381, %v404
      %v407 = vadd.f32 %v382, %v405
      %408 = vrot.lane.b32.xlu0 %v298, 127
      %v409 = vpop.permute.xlu0 %408
      %410 = vrot.lane.b32.xlu0 %v299, 127
      %v411 = vpop.permute.xlu0 %410
      %vm412 = vcmp.lt.s32.totalorder %v311, 127
      %v413 = vsel %vm412, %v409, %v411
      %v414 = vsel %vm412, %v411, %v409
      %v415 = vlaneseq
      %v416 = vshrl.u32 %v415, 7
      %v417 = vsub.s32 5, %v416
      %v418 = vrot.slane %v207, %v417
      %v419 = vlaneseq
      %v420 = vshrl.u32 %v419, 7
      %v421 = vsub.s32 5, %v420
      %v422 = vrot.slane %v208, %v421
      %v423 = vmul.f32 %v413, %v418
      %v424 = vmul.f32 %v414, %v422
      %425 = vset.pattern.permute.xlu0 5
      %426 = vperm.xlu0 %425, %v206
      %v427 = vpop.permute.xlu0 %426
      %v429 = vmul.f32 %v423, %v427
      %v430 = vmul.f32 %v424, %v427
      %v431 = vadd.f32 %v406, %v429
      %v432 = vadd.f32 %v407, %v430
      %433 = vrot.lane.b32.xlu0 %v298, 113
      %v434 = vpop.permute.xlu0 %433
      %435 = vrot.lane.b32.xlu0 %v299, 113
      %v436 = vpop.permute.xlu0 %435
      %vm437 = vcmp.lt.s32.totalorder %v311, 113
      %v438 = vsel %vm437, %v434, %v436
      %v439 = vsel %vm437, %v436, %v434
      %v440 = vlaneseq
      %v441 = vshrl.u32 %v440, 7
      %v442 = vsub.s32 6, %v441
      %v443 = vrot.slane %v207, %v442
      %v444 = vlaneseq
      %v445 = vshrl.u32 %v444, 7
      %v446 = vsub.s32 6, %v445
      %v447 = vrot.slane %v208, %v446
      %v448 = vmul.f32 %v438, %v443
      %v449 = vmul.f32 %v439, %v447
      %450 = vset.pattern.permute.xlu0 6
      %451 = vperm.xlu0 %450, %v206
      %v452 = vpop.permute.xlu0 %451
      %v454 = vmul.f32 %v448, %v452
      %v455 = vmul.f32 %v449, %v452
      %v456 = vadd.f32 %v431, %v454
      %v457 = vadd.f32 %v432, %v455
      %458 = vrot.lane.b32.xlu0 %v298, 112
      %v459 = vpop.permute.xlu0 %458
      %460 = vrot.lane.b32.xlu0 %v299, 112
      %v461 = vpop.permute.xlu0 %460
      %vm462 = vcmp.lt.s32.totalorder %v311, 112
      %v463 = vsel %vm462, %v459, %v461
      %v464 = vsel %vm462, %v461, %v459
      %v465 = vlaneseq
      %v466 = vshrl.u32 %v465, 7
      %v467 = vsub.s32 7, %v466
      %v468 = vrot.slane %v207, %v467
      %v469 = vlaneseq
      %v470 = vshrl.u32 %v469, 7
      %v471 = vsub.s32 7, %v470
      %v472 = vrot.slane %v208, %v471
      %v473 = vmul.f32 %v463, %v468
      %v474 = vmul.f32 %v464, %v472
      %475 = vset.pattern.permute.xlu0 7
      %476 = vperm.xlu0 %475, %v206
      %v477 = vpop.permute.xlu0 %476
      %v479 = vmul.f32 %v473, %v477
      %v480 = vmul.f32 %v474, %v477
      %v481 = vadd.f32 %v456, %v479
      %v482 = vadd.f32 %v457, %v480
      %483 = vrot.lane.b32.xlu0 %v298, 111
      %v484 = vpop.permute.xlu0 %483
      %485 = vrot.lane.b32.xlu0 %v299, 111
      %v486 = vpop.permute.xlu0 %485
      %vm487 = vcmp.lt.s32.totalorder %v311, 111
      %v488 = vsel %vm487, %v484, %v486
      %v489 = vsel %vm487, %v486, %v484
      %v490 = vlaneseq
      %v491 = vshrl.u32 %v490, 7
      %v492 = vsub.s32 0, %v491
      %v493 = vrot.slane %v209, %v492
      %v494 = vlaneseq
      %v495 = vshrl.u32 %v494, 7
      %v496 = vsub.s32 0, %v495
      %v497 = vrot.slane %v210, %v496
      %v498 = vmul.f32 %v488, %v493
      %v499 = vmul.f32 %v489, %v497
      %500 = vset.pattern.permute.xlu0 8
      %501 = vperm.xlu0 %500, %v206
      %v502 = vpop.permute.xlu0 %501
      %v504 = vmul.f32 %v498, %v502
      %v505 = vmul.f32 %v499, %v502
      %v506 = vadd.f32 %v481, %v504
      %v507 = vadd.f32 %v482, %v505
      %508 = vset.pattern.permute.xlu0 10
      %509 = vperm.xlu0 %508, %v206
      %v510 = vpop.permute.xlu0 %509
      %v512 = vadd.f32 %v506, %v510
      %v513 = vadd.f32 %v507, %v510
      %514 = vset.pattern.permute.xlu0 11
      %515 = vperm.xlu0 %514, %v206
      %v516 = vpop.permute.xlu0 %515
      %v519 = vsel %vm218, %v203, 0
      %v522 = vsel %vm222, %v512, 0
      %v525 = vsel %vm222, %v513, 0
      %527 = vmatprep.subr.mxu0 0.0
      %528 = vmatpush1.msra.mxu0 0.0
      %529 = vmatprep.subr.mxu0 0.0
      %530 = vmatpush1.msra.mxu0 0.0
      %531 = vmatprep.subr.mxu0 0.0
      %532 = vmatpush1.msra.mxu0 0.0
      %533 = vmatprep.subr.mxu0 0.0
      %534 = vmatpush1.msra.mxu0 0.0
      %535 = vmatprep.subr.mxu0 0.0
      %536 = vmatpush1.msra.mxu0 0.0
      %537 = vmatprep.subr.mxu0 0.0
      %538 = vmatpush1.msra.mxu0 0.0
      %539 = vmatprep.subr.mxu0 0.0
      %540 = vmatpush1.msra.mxu0 0.0
      %541 = vmatprep.subr.mxu0 0.0
      %542 = vmatpush1.msra.mxu0 0.0
      %543 = vmatprep.subr.mxu0 0.0
      %544 = vmatpush1.msra.mxu0 0.0
      %545 = vmatprep.subr.mxu0 0.0
      %546 = vmatpush1.msra.mxu0 0.0
      %547 = vmatprep.subr.mxu0 0.0
      %548 = vmatpush1.msra.mxu0 0.0
      %549 = vmatprep.subr.mxu0 0.0
      %550 = vmatpush1.msra.mxu0 0.0
      %551 = vmatprep.subr.mxu0 0.0
      %552 = vmatpush1.msra.mxu0 0.0
      %553 = vmatprep.subr.mxu0 0.0
      %554 = vmatpush1.msra.mxu0 0.0
      %555 = vmatprep.subr.mxu0 0.0
      %556 = vmatpush1.msra.mxu0 0.0
      %557 = vmatprep.subr.mxu0 %v525
      %558 = vmatpush1.msra.mxu0 %v522
      %559 = vmatprep.subr.mxu0 0.0
      %560 = vmatpush2.msra.mxu0 0.0
      %561 = vmatprep.subr.mxu0 0.0
      %562 = vmatpush2.msra.mxu0 0.0
      %563 = vmatprep.subr.mxu0 0.0
      %564 = vmatpush2.msra.mxu0 0.0
      %565 = vmatprep.subr.mxu0 0.0
      %566 = vmatpush2.msra.mxu0 0.0
      %567 = vmatprep.subr.mxu0 0.0
      %568 = vmatpush2.msra.mxu0 0.0
      %569 = vmatprep.subr.mxu0 0.0
      %570 = vmatpush2.msra.mxu0 0.0
      %571 = vmatprep.subr.mxu0 0.0
      %572 = vmatpush2.msra.mxu0 0.0
      %573 = vmatprep.subr.mxu0 0.0
      %574 = vmatpush2.msra.mxu0 0.0
      %575 = vmatprep.subr.mxu0 0.0
      %576 = vmatpush2.msra.mxu0 0.0
      %577 = vmatprep.subr.mxu0 0.0
      %578 = vmatpush2.msra.mxu0 0.0
      %579 = vmatprep.subr.mxu0 0.0
      %580 = vmatpush2.msra.mxu0 0.0
      %581 = vmatprep.subr.mxu0 0.0
      %582 = vmatpush2.msra.mxu0 0.0
      %583 = vmatprep.subr.mxu0 0.0
      %584 = vmatpush2.msra.mxu0 0.0
      %585 = vmatprep.subr.mxu0 0.0
      %586 = vmatpush2.msra.mxu0 0.0
      %587 = vmatprep.subr.mxu0 0.0
      %588 = vmatpush2.msra.mxu0 0.0
      %589 = vmatprep.subr.mxu0 0.0
      %590 = vmatpush2.msra.mxu0 0.0
      %591 = vmatprep.mubr.f32.mxu0 0.0
      %592 = vmatmul.mubr.f32.gmra.mxu0 %v519
      %v593 = vpop.f32.mrf.mxu0
      %v594 = vadd.f32 %v516, %v593
      %v595 = vpop.f32.mrf.mxu0
      %v596 = vadd.f32 %v516, %v595
      %597 = vdwg.mxu0
      %v598 = vmax.f32 %v594, 0.0
      %v599 = vmax.f32 %v596, 0.0
      %v601 = vcombine.high %v198, %v198
      %v603 = vsel %vm218, %v205, 0
      %v605 = vsel %vm222, %v198, 0
      %v607 = vsel %vm222, %v601, 0
      %609 = vmatprep.subr.mxu0 0.0
      %610 = vmatpush1.msra.mxu0 0.0
      %611 = vmatprep.subr.mxu0 0.0
      %612 = vmatpush1.msra.mxu0 0.0
      %613 = vmatprep.subr.mxu0 0.0
      %614 = vmatpush1.msra.mxu0 0.0
      %615 = vmatprep.subr.mxu0 0.0
      %616 = vmatpush1.msra.mxu0 0.0
      %617 = vmatprep.subr.mxu0 0.0
      %618 = vmatpush1.msra.mxu0 0.0
      %619 = vmatprep.subr.mxu0 0.0
      %620 = vmatpush1.msra.mxu0 0.0
      %621 = vmatprep.subr.mxu0 0.0
      %622 = vmatpush1.msra.mxu0 0.0
      %623 = vmatprep.subr.mxu0 0.0
      %624 = vmatpush1.msra.mxu0 0.0
      %625 = vmatprep.subr.mxu0 0.0
      %626 = vmatpush1.msra.mxu0 0.0
      %627 = vmatprep.subr.mxu0 0.0
      %628 = vmatpush1.msra.mxu0 0.0
      %629 = vmatprep.subr.mxu0 0.0
      %630 = vmatpush1.msra.mxu0 0.0
      %631 = vmatprep.subr.mxu0 0.0
      %632 = vmatpush1.msra.mxu0 0.0
      %633 = vmatprep.subr.mxu0 0.0
      %634 = vmatpush1.msra.mxu0 0.0
      %635 = vmatprep.subr.mxu0 0.0
      %636 = vmatpush1.msra.mxu0 0.0
      %637 = vmatprep.subr.mxu0 0.0
      %638 = vmatpush1.msra.mxu0 0.0
      %639 = vmatprep.subr.mxu0 %v607
      %640 = vmatpush1.msra.mxu0 %v605
      %641 = vmatprep.subr.mxu0 0.0
      %642 = vmatpush2.msra.mxu0 0.0
      %643 = vmatprep.subr.mxu0 0.0
      %644 = vmatpush2.msra.mxu0 0.0
      %645 = vmatprep.subr.mxu0 0.0
      %646 = vmatpush2.msra.mxu0 0.0
      %647 = vmatprep.subr.mxu0 0.0
      %648 = vmatpush2.msra.mxu0 0.0
      %649 = vmatprep.subr.mxu0 0.0
      %650 = vmatpush2.msra.mxu0 0.0
      %651 = vmatprep.subr.mxu0 0.0
      %652 = vmatpush2.msra.mxu0 0.0
      %653 = vmatprep.subr.mxu0 0.0
      %654 = vmatpush2.msra.mxu0 0.0
      %655 = vmatprep.subr.mxu0 0.0
      %656 = vmatpush2.msra.mxu0 0.0
      %657 = vmatprep.subr.mxu0 0.0
      %658 = vmatpush2.msra.mxu0 0.0
      %659 = vmatprep.subr.mxu0 0.0
      %660 = vmatpush2.msra.mxu0 0.0
      %661 = vmatprep.subr.mxu0 0.0
      %662 = vmatpush2.msra.mxu0 0.0
      %663 = vmatprep.subr.mxu0 0.0
      %664 = vmatpush2.msra.mxu0 0.0
      %665 = vmatprep.subr.mxu0 0.0
      %666 = vmatpush2.msra.mxu0 0.0
      %667 = vmatprep.subr.mxu0 0.0
      %668 = vmatpush2.msra.mxu0 0.0
      %669 = vmatprep.subr.mxu0 0.0
      %670 = vmatpush2.msra.mxu0 0.0
      %671 = vmatprep.subr.mxu0 0.0
      %672 = vmatpush2.msra.mxu0 0.0
      %673 = vmatprep.mubr.f32.mxu0 0.0
      %674 = vmatmul.mubr.f32.gmra.mxu0 %v603
      %v675 = vpop.f32.mrf.mxu0
      %v676 = vadd.f32 0.0, %v675
      %v677 = vpop.f32.mrf.mxu0
      %v678 = vadd.f32 0.0, %v677
      %679 = vdwg.mxu0
      %v680 = vadd.f32 %v598, %v676
      %v681 = vadd.f32 %v599, %v678
      %682 = vst [vmem:[%s197] sm:$0xff] %v680
      %683 = vst [vmem:[%s197 + $0x8] sm:$0xff] %v681
      %p684 = scmp.lt.s32.totalorder %s15, 1
      %s685 = scalar_select %p684, %s15, 1
      %s686 = smul.addr %s685, 2
      %s687 = smul.addr %s686, 8
      %s688 = scalar_lea.vmem %s4, %s687
      // Predicated region
      $region37: #{inverted_residual_stride1.1} parent=35 // pred_check
        %p689 = pneg %p122
      $region38: #{inverted_residual_stride1.1} parent=35 // pred_check_branch
        %691 = sbr.rel (%p689) target = $region40
      $region39: #{inverted_residual_stride1.1} parent=35 // pred_region
        _
      $region40: #{inverted_residual_stride1.1} parent=35 // pred_fallthru
        _
    $region36: #{inverted_residual_stride1.1} parent=5 // pred_fallthru
      _
    %p692 = scmp.le.s32.totalorder 2, %s10
    // Predicated region
    $region41: #{inverted_residual_stride1.1} parent=5 // pred_check
      %p693 = pneg %p692
    $region42: #{inverted_residual_stride1.1} parent=5 // pred_check_branch
      %695 = sbr.rel (%p693) target = $region44
    $region43: #{inverted_residual_stride1.1} parent=5 // pred_region
      %s696 = ssub.s32 %s10, 2
      // Predicated region
      $region45: #{inverted_residual_stride1.1} parent=43 // pred_check
        %p697 = pneg %p128
      $region46: #{inverted_residual_stride1.1} parent=43 // pred_check_branch
        %699 = sbr.rel (%p697) target = $region48
      $region47: #{inverted_residual_stride1.1} parent=43 // pred_region
        %p700 = scmp.lt.s32.totalorder %s16, 1
        %s701 = scalar_select %p700, %s16, 1
        %s702 = smul.addr %s701, 2
        %s703 = smul.addr %s702, 8
        %s704 = scalar_lea.vmem %s4, %s703
      $region48: #{inverted_residual_stride1.1} parent=43 // pred_fallthru
        _
    $region44: #{inverted_residual_stride1.1} parent=5 // pred_fallthru
      _
  $region6: #{inverted_residual_stride1.1} parent=0 // loop_footer
    %s14 = sadd.s32 1, %s10
  $region7: #{inverted_residual_stride1.1} parent=0 // loop_footer_branch
    %9 = sbr.rel target = $region3
  $region8: #{inverted_residual_stride1.1} parent=0 // loop_exit
    _

</llo_original>
